<compile_context>
chip_gen: v7x
topology: tpu7x:2x2x1
jax: 0.10.0
libtpu: 0.0.40
codegen_flags: <defaults>
</compile_context>

<pallas_src>
import jax
import jax.numpy as jnp
from jax.experimental import pallas as pl
from jax.experimental.pallas import tpu as pltpu


# ----------------------------------------------------------------------------
# Hardware-aware sizing helpers (per-generation VMEM budgets)
# ----------------------------------------------------------------------------
def _vmem_capacity_bytes() -> int:
    """Per-TensorCore VMEM capacity (v5e/v6e: 128 MiB, v7x: 64 MiB)."""
    try:
        info = pltpu.get_tpu_info()
        cap = int(getattr(info, "vmem_capacity_bytes", 0))
        if cap > 0:
            return cap
    except Exception:
        pass
    return 64 * 2**20  # conservative: smallest current generation (v7x)


def _choose_tile_hw(hw: int, per_pixel_bytes: int, max_tile_cap: int = 8192) -> int:
    """Largest multiple-of-128 divisor of hw whose double-buffered blocks fit VMEM.

    Per-grid-step overhead (~0.35 us) dominates memory-bound kernels with tiny
    blocks, so the HW tile is sized from the actual VMEM capacity of the
    generation we run on instead of a fixed cap.
    """
    if hw % 128 != 0:
        return hw  # full-extent block still satisfies the (8,128) rule
    usable = int(_vmem_capacity_bytes() * 0.75)          # headroom for scratch
    by_vmem = usable // (4 * max(per_pixel_bytes, 1))    # 2 in + 2 out buffers
    max_tile = max(128, min(max_tile_cap, (by_vmem // 128) * 128))
    best, t = 128, 128
    while t <= min(hw, max_tile):
        if hw % t == 0:
            best = t
        t += 128
    return best


def _choose_batch_fold(batch: int, n_tiles: int, per_pixel_bytes: int,
                       tile_hw: int, target_bytes: int = 1 << 20,
                       max_fold: int = 8) -> int:
    """Fold batch rows into one block when a full-HW tile is still tiny.

    Keeps >= 2 grid steps whenever batch >= 2 so both v7x TensorCores get work
    (both grid axes are marked "parallel"; on v5e/v6e this is a no-op).
    """
    if n_tiles > 1 or batch <= 2:
        return 1
    bb = 1
    step_bytes = per_pixel_bytes * tile_hw
    while (bb < max_fold
           and batch % (2 * bb) == 0
           and batch // (2 * bb) >= 2
           and step_bytes * 2 * bb <= target_bytes):
        bb *= 2
    return bb


def _compiler_params(block_bytes: int) -> pltpu.CompilerParams:
    cap = _vmem_capacity_bytes()
    # Double-buffered blocks + headroom, never above ~75% of this generation's
    # VMEM (so v6e/v5e get ~96 MiB, v7x ~48 MiB).
    limit = int(min(max(4 * block_bytes + (4 << 20), 8 << 20), int(cap * 0.75)))
    return pltpu.CompilerParams(
        dimension_semantics=("parallel", "parallel"),
        vmem_limit_bytes=limit,
    )


# ----------------------------------------------------------------------------
# Kernel 1: model forward — per-pixel 1x1-conv + softmax (module.forward())
#   Lane-dense class-major (C, T) compute AND store; no in-kernel transpose.
# ----------------------------------------------------------------------------
def _forward_kernel(x_ref, wt_ref, b_ref, conf_ref):
    # x_ref   : (BB, Cin, T)  blocks of x viewed as (B, Cin, HW) (NCHW, no host transpose)
    # wt_ref  : (C, Cin), b_ref: (C, 1)
    # conf_ref: (BB, C, T)    lane-dense class-major softmax confidences
    bb = x_ref.shape[0]
    for bi in range(bb):                                   # tiny static unroll
        logits = jnp.dot(wt_ref[...], x_ref[bi],
                         preferred_element_type=jnp.float32) + b_ref[...]   # (C, T)
        m = jnp.max(logits, axis=0, keepdims=True)                          # (1, T)
        e = jnp.exp(logits - m)                                             # (C, T)
        denom = jnp.sum(e, axis=0, keepdims=True)                           # (1, T)
        conf_ref[bi] = (e * pl.reciprocal(denom, approx=True)).astype(conf_ref.dtype)


def plabel_forward_class_major(x_nchw, weight, bias, *, tile_hw=None):
    """x (B, Cin, H, W) f32 -> lane-dense confidences (B, C, H*W) f32."""
    B, Cin, H, W = x_nchw.shape
    C = weight.shape[1]
    HW = H * W
    per_pix = 4 * (Cin + C)                      # x in + conf out, bytes/pixel
    T = tile_hw or _choose_tile_hw(HW, per_pix)
    assert HW % T == 0
    n_tiles = HW // T
    BB = _choose_batch_fold(B, n_tiles, per_pix, T)
    assert B % BB == 0

    x_chw = x_nchw.reshape(B, Cin, HW)           # free view of contiguous NCHW
    w_t = weight.T                               # (C, Cin), tiny
    b_col = bias.reshape(C, 1)

    block_bytes = 4 * (BB * Cin * T + C * Cin + C + BB * C * T)
    return pl.pallas_call(
        _forward_kernel,
        out_shape=jax.ShapeDtypeStruct((B, C, HW), jnp.float32),
        grid_spec=pltpu.PrefetchScalarGridSpec(
            num_scalar_prefetch=0,
            grid=(B // BB, n_tiles),
            in_specs=[
                pl.BlockSpec((BB, Cin, T), lambda b, t: (b, 0, t)),
                pl.BlockSpec((C, Cin), lambda b, t: (0, 0)),
                pl.BlockSpec((C, 1), lambda b, t: (0, 0)),
            ],
            out_specs=pl.BlockSpec((BB, C, T), lambda b, t: (b, 0, t)),
        ),
        compiler_params=_compiler_params(block_bytes),
    )(x_chw, w_t, b_col)


def plabel_forward(x_nchw, weight, bias, *, tile_hw=None):
    """Module forward(): (B, Cin, H, W) -> confidences (B, H*W, C).

    The kernel stores class-major (B, C, HW) (lane-dense, no masked stores);
    the module-mandated (B, HW, C) layout is one XLA permute at the boundary.
    Note: confidences carry ~1e-3 relative error from the approximate
    reciprocal (EUP); argmax and the log-ratio CE losses are unaffected.
    """
    conf_cm = plabel_forward_class_major(x_nchw, weight, bias, tile_hw=tile_hw)
    return jnp.transpose(conf_cm, (0, 2, 1))


# ----------------------------------------------------------------------------
# Kernel 2 (fused training step): logits -> pseudolabels + labeled/unlabeled CE
#   Never materializes confidences in HBM.
# ----------------------------------------------------------------------------
def _fused_train_kernel(x_ref, wt_ref, b_ref, labels_ref,
                        plab_ref, lab_part_ref, unlab_part_ref):
    # x_ref      : (BB, Cin, T), wt_ref: (C, Cin), b_ref: (C, 1)
    # labels_ref : (BB, 1, T) int32 (true labels)
    # plab_ref   : (BB, 1, T) int32 (pseudolabels = argmax over classes)
    # *_part_ref : (1, 1, 1, 128) f32 per-grid-step NLL sums
    bb = x_ref.shape[0]
    num_classes = wt_ref.shape[0]
    lab_sum = jnp.float32(0.0)
    unlab_sum = jnp.float32(0.0)
    for bi in range(bb):
        logits = jnp.dot(wt_ref[...], x_ref[bi],
                         preferred_element_type=jnp.float32) + b_ref[...]   # (C, T)
        m = jnp.max(logits, axis=0, keepdims=True)                          # (1, T)
        lse = m + jnp.log(jnp.sum(jnp.exp(logits - m), axis=0, keepdims=True))
        cls_iota = jax.lax.broadcasted_iota(jnp.int32, logits.shape, 0)     # (C, T)
        # argmax over classes (first maximal index) -> pseudolabels
        plab = jnp.min(jnp.where(logits == m, cls_iota, num_classes),
                       axis=0, keepdims=True)                               # (1, T)
        plab_ref[bi] = plab.astype(jnp.int32)
        # labeled CE from logits: logsumexp(z) - z[label]
        labels = labels_ref[bi]                                             # (1, T)
        picked = jnp.sum(jnp.where(cls_iota == labels, logits, 0.0),
                         axis=0, keepdims=True)
        lab_sum = lab_sum + jnp.sum(lse - picked)
        # unlabeled CE against the pseudolabel: logsumexp(z) - max(z)
        unlab_sum = unlab_sum + jnp.sum(lse - m)
    lab_part_ref[...] = jnp.full(lab_part_ref.shape, lab_sum, dtype=jnp.float32)
    unlab_part_ref[...] = jnp.full(unlab_part_ref.shape, unlab_sum,
                                   dtype=jnp.float32)


def plabel_train_step(x_nchw, weight, bias, labels, *, tile_hw=None):
    """Fused: x (NCHW), true labels -> (pseudolabels (B,HW), labeled CE, unlabeled CE)."""
    B, Cin, H, W = x_nchw.shape
    C = weight.shape[1]
    HW = H * W
    per_pix = 4 * (Cin + 2)                      # x + labels in, plab out
    T = tile_hw or _choose_tile_hw(HW, per_pix)
    assert HW % T == 0
    n_tiles = HW // T
    BB = _choose_batch_fold(B, n_tiles, per_pix, T)

    x_chw = x_nchw.reshape(B, Cin, HW)
    w_t = weight.T
    b_col = bias.reshape(C, 1)
    labels3 = labels.reshape(B, 1, HW).astype(jnp.int32)

    block_bytes = 4 * (BB * (Cin + 2) * T + C * Cin + C + 2 * 128)
    plab3, lab_part, unlab_part = pl.pallas_call(
        _fused_train_kernel,
        out_shape=(
            jax.ShapeDtypeStruct((B, 1, HW), jnp.int32),
            jax.ShapeDtypeStruct((B // BB, n_tiles, 1, 128), jnp.float32),
            jax.ShapeDtypeStruct((B // BB, n_tiles, 1, 128), jnp.float32),
        ),
        grid_spec=pltpu.PrefetchScalarGridSpec(
            num_scalar_prefetch=0,
            grid=(B // BB, n_tiles),
            in_specs=[
                pl.BlockSpec((BB, Cin, T), lambda b, t: (b, 0, t)),
                pl.BlockSpec((C, Cin), lambda b, t: (0, 0)),
                pl.BlockSpec((C, 1), lambda b, t: (0, 0)),
                pl.BlockSpec((BB, 1, T), lambda b, t: (b, 0, t)),
            ],
            out_specs=(
                pl.BlockSpec((BB, 1, T), lambda b, t: (b, 0, t)),
                pl.BlockSpec((1, 1, 1, 128), lambda b, t: (b, t, 0, 0)),
                pl.BlockSpec((1, 1, 1, 128), lambda b, t: (b, t, 0, 0)),
            ),
        ),
        compiler_params=_compiler_params(block_bytes),
    )(x_chw, w_t, b_col, labels3)

    denom = B * HW
    return (plab3.reshape(B, HW),
            jnp.sum(lab_part[..., 0]) / denom,
            jnp.sum(unlab_part[..., 0]) / denom)


# ----------------------------------------------------------------------------
# Confidence consumers (class-major, lane-dense input blocks)
# ----------------------------------------------------------------------------
def _to_class_major(confidences, class_major):
    if class_major:
        return confidences                       # already (B, C, HW)
    # module-contract (B, HW, C): one XLA permute at the API boundary; the
    # kernels below always read lane-dense class-major blocks.
    return jnp.transpose(confidences, (0, 2, 1))


# Kernel 3: compute_pseudolabels — argmax over the class (sublane) axis
def _pseudolabel_kernel(conf_ref, plab_ref):
    bb, num_classes = conf_ref.shape[0], conf_ref.shape[1]
    for bi in range(bb):
        conf = conf_ref[bi]                                              # (C, T)
        m = jnp.max(conf, axis=0, keepdims=True)
        cls_iota = jax.lax.broadcasted_iota(jnp.int32, conf.shape, 0)
        plab_ref[bi] = jnp.min(jnp.where(conf == m, cls_iota, num_classes),
                               axis=0, keepdims=True).astype(jnp.int32)


def compute_pseudolabels(confidences, *, class_major=False, tile_hw=None):
    conf_cm = _to_class_major(confidences, class_major)
    B, C, HW = conf_cm.shape
    per_pix = 4 * (C + 1)
    T = tile_hw or _choose_tile_hw(HW, per_pix)
    assert HW % T == 0
    n_tiles = HW // T
    BB = _choose_batch_fold(B, n_tiles, per_pix, T)

    block_bytes = 4 * BB * (C + 1) * T
    plab3 = pl.pallas_call(
        _pseudolabel_kernel,
        out_shape=jax.ShapeDtypeStruct((B, 1, HW), jnp.int32),
        grid_spec=pltpu.PrefetchScalarGridSpec(
            num_scalar_prefetch=0,
            grid=(B // BB, n_tiles),
            in_specs=[pl.BlockSpec((BB, C, T), lambda b, t: (b, 0, t))],
            out_specs=pl.BlockSpec((BB, 1, T), lambda b, t: (b, 0, t)),
        ),
        compiler_params=_compiler_params(block_bytes),
    )(conf_cm)
    return plab3.reshape(B, HW)


# Kernel 4: compute_loss — CE(log(conf).permute(0,2,1), labels).
#   Only 2*T logs per row: log(sum_c conf) and log(conf[label]).
def _ce_loss_kernel(conf_ref, labels_ref, part_ref):
    bb = conf_ref.shape[0]
    total = jnp.float32(0.0)
    for bi in range(bb):
        conf = conf_ref[bi]                                              # (C, T)
        cls_iota = jax.lax.broadcasted_iota(jnp.int32, conf.shape, 0)
        lse = jnp.log(jnp.sum(conf, axis=0, keepdims=True))              # (1, T)
        labels = labels_ref[bi]                                          # (1, T)
        picked = jnp.sum(jnp.where(cls_iota == labels, conf, 0.0),
                         axis=0, keepdims=True)
        total = total + jnp.sum(lse - jnp.log(picked))
    part_ref[...] = jnp.full(part_ref.shape, total, dtype=jnp.float32)


def compute_loss(confidences, labels, *, class_major=False, tile_hw=None):
    # TODO(synk): no ignore_index handling (torch CrossEntropyLoss default -100);
    # labels are assumed to lie in [0, C), and conf[label] == 0 gives inf like
    # the literal torch.log(conf) math would.
    conf_cm = _to_class_major(confidences, class_major)
    B, C, HW = conf_cm.shape
    per_pix = 4 * (C + 1)
    T = tile_hw or _choose_tile_hw(HW, per_pix)
    assert HW % T == 0
    n_tiles = HW // T
    BB = _choose_batch_fold(B, n_tiles, per_pix, T)
    labels3 = labels.reshape(B, 1, HW).astype(jnp.int32)

    block_bytes = 4 * (BB * (C + 1) * T + 128)
    part = pl.pallas_call(
        _ce_loss_kernel,
        out_shape=jax.ShapeDtypeStruct((B // BB, n_tiles, 1, 128), jnp.float32),
        grid_spec=pltpu.PrefetchScalarGridSpec(
            num_scalar_prefetch=0,
            grid=(B // BB, n_tiles),
            in_specs=[
                pl.BlockSpec((BB, C, T), lambda b, t: (b, 0, t)),
                pl.BlockSpec((BB, 1, T), lambda b, t: (b, 0, t)),
            ],
            out_specs=pl.BlockSpec((1, 1, 1, 128), lambda b, t: (b, t, 0, 0)),
        ),
        compiler_params=_compiler_params(block_bytes),
    )(conf_cm, labels3)
    return jnp.sum(part[..., 0]) / (B * HW)


# Kernel 5 (fused consumer): one conf read -> pseudolabels + both CE losses
def _conf_fused_kernel(conf_ref, labels_ref, plab_ref, lab_part_ref, unlab_part_ref):
    bb, num_classes = conf_ref.shape[0], conf_ref.shape[1]
    lab_sum = jnp.float32(0.0)
    unlab_sum = jnp.float32(0.0)
    for bi in range(bb):
        conf = conf_ref[bi]                                              # (C, T)
        m = jnp.max(conf, axis=0, keepdims=True)                         # (1, T)
        cls_iota = jax.lax.broadcasted_iota(jnp.int32, conf.shape, 0)
        plab = jnp.min(jnp.where(conf == m, cls_iota, num_classes),
                       axis=0, keepdims=True)
        plab_ref[bi] = plab.astype(jnp.int32)
        lse = jnp.log(jnp.sum(conf, axis=0, keepdims=True))              # (1, T)
        labels = labels_ref[bi]
        picked = jnp.sum(jnp.where(cls_iota == labels, conf, 0.0),
                         axis=0, keepdims=True)
        lab_sum = lab_sum + jnp.sum(lse - jnp.log(picked))
        unlab_sum = unlab_sum + jnp.sum(lse - jnp.log(m))
    lab_part_ref[...] = jnp.full(lab_part_ref.shape, lab_sum, dtype=jnp.float32)
    unlab_part_ref[...] = jnp.full(unlab_part_ref.shape, unlab_sum,
                                   dtype=jnp.float32)


def pseudolabels_and_losses(confidences, labels, *, class_major=False, tile_hw=None):
    """Fused consumer: one HBM read of conf -> (pseudolabels, labeled CE, unlabeled CE)."""
    conf_cm = _to_class_major(confidences, class_major)
    B, C, HW = conf_cm.shape
    per_pix = 4 * (C + 2)
    T = tile_hw or _choose_tile_hw(HW, per_pix)
    assert HW % T == 0
    n_tiles = HW // T
    BB = _choose_batch_fold(B, n_tiles, per_pix, T)
    labels3 = labels.reshape(B, 1, HW).astype(jnp.int32)

    block_bytes = 4 * (BB * (C + 2) * T + 2 * 128)
    plab3, lab_part, unlab_part = pl.pallas_call(
        _conf_fused_kernel,
        out_shape=(
            jax.ShapeDtypeStruct((B, 1, HW), jnp.int32),
            jax.ShapeDtypeStruct((B // BB, n_tiles, 1, 128), jnp.float32),
            jax.ShapeDtypeStruct((B // BB, n_tiles, 1, 128), jnp.float32),
        ),
        grid_spec=pltpu.PrefetchScalarGridSpec(
            num_scalar_prefetch=0,
            grid=(B // BB, n_tiles),
            in_specs=[
                pl.BlockSpec((BB, C, T), lambda b, t: (b, 0, t)),
                pl.BlockSpec((BB, 1, T), lambda b, t: (b, 0, t)),
            ],
            out_specs=(
                pl.BlockSpec((BB, 1, T), lambda b, t: (b, 0, t)),
                pl.BlockSpec((1, 1, 1, 128), lambda b, t: (b, t, 0, 0)),
                pl.BlockSpec((1, 1, 1, 128), lambda b, t: (b, t, 0, 0)),
            ),
        ),
        compiler_params=_compiler_params(block_bytes),
    )(conf_cm, labels3)
    denom = B * HW
    return (plab3.reshape(B, HW),
            jnp.sum(lab_part[..., 0]) / denom,
            jnp.sum(unlab_part[..., 0]) / denom)


# ----------------------------------------------------------------------------
# Plain-Python helper mirrored from PLabel.calculate_alpha (scalar schedule)
# ----------------------------------------------------------------------------
def calculate_alpha(t, t1, t2, max_alpha):
    schedule_ratio = (t - t1) / (t2 - t1) * max_alpha
    return min(max(0.0, schedule_ratio), max_alpha)


if __name__ == "__main__":
    key = jax.random.PRNGKey(0)
    B, Cin, H, W = 2, 4, 16, 16
    num_classes = 8

    k_x, k_w, k_b, k_lab = jax.random.split(key, 4)
    x = jax.random.normal(k_x, (B, Cin, H, W), dtype=jnp.float32)
    weight = 0.1 * jax.random.normal(k_w, (Cin, num_classes), dtype=jnp.float32)
    bias = 0.05 * jax.random.normal(k_b, (1, num_classes), dtype=jnp.float32)
    true_labels = jax.random.randint(k_lab, (B, H * W), 0, num_classes,
                                     dtype=jnp.int32)

    # Module forward(): lane-dense kernel output + one XLA permute to (B, HW, C)
    conf_cm = jax.block_until_ready(plabel_forward_class_major(x, weight, bias))
    conf = jax.block_until_ready(jnp.transpose(conf_cm, (0, 2, 1)))

    # Standalone module methods (class-major kernel path)
    pseudolabels = jax.block_until_ready(
        compute_pseudolabels(conf_cm, class_major=True))
    labeled_loss = jax.block_until_ready(
        compute_loss(conf_cm, true_labels, class_major=True))
    unlabeled_loss = jax.block_until_ready(
        compute_loss(conf_cm, pseudolabels, class_major=True))

    # Fused consumer: conf read from HBM once for all three results
    plab_fused, lab_fused, unlab_fused = pseudolabels_and_losses(
        conf_cm, true_labels, class_major=True)
    plab_fused = jax.block_until_ready(plab_fused)
    lab_fused = jax.block_until_ready(lab_fused)
    unlab_fused = jax.block_until_ready(unlab_fused)

    # Fully fused training-step kernel (no confidence round-trip through HBM)
    plab_ts, lab_ts, unlab_ts = plabel_train_step(x, weight, bias, true_labels)
    plab_ts = jax.block_until_ready(plab_ts)
    lab_ts = jax.block_until_ready(lab_ts)
    unlab_ts = jax.block_until_ready(unlab_ts)

    alpha = calculate_alpha(t=350, t1=100, t2=600, max_alpha=3.0)
    total_loss = jax.block_until_ready(lab_ts + alpha * unlab_ts)

    # ---------------- correctness checks vs a pure-JAX reference -------------
    x_flat = jnp.transpose(x, (0, 2, 3, 1)).reshape(B, H * W, Cin)
    logits_ref = x_flat @ weight + bias
    conf_ref = jax.nn.softmax(logits_ref, axis=-1)
    plab_ref = jnp.argmax(logits_ref, axis=-1).astype(jnp.int32)
    logp_ref = jax.nn.log_softmax(logits_ref, axis=-1)
    nll_lab_ref = -jnp.take_along_axis(logp_ref, true_labels[..., None],
                                       axis=-1)[..., 0]
    nll_unlab_ref = -jnp.take_along_axis(logp_ref, plab_ref[..., None],
                                         axis=-1)[..., 0]

    # Forward uses approx reciprocal -> loosened tolerance.
    assert jnp.allclose(conf, conf_ref, atol=1e-2, rtol=1e-2)
    # Pseudolabels: exact vs argmax of the kernel conf and vs logits.
    assert jnp.array_equal(pseudolabels,
                           jnp.argmax(conf, axis=-1).astype(jnp.int32))
    assert jnp.array_equal(plab_fused, pseudolabels)
    assert jnp.array_equal(plab_ts, plab_ref)
    # Fused training-step losses: exact logits math, tight tolerance.
    assert jnp.allclose(lab_ts, jnp.mean(nll_lab_ref), atol=1e-4, rtol=1e-4)
    assert jnp.allclose(unlab_ts, jnp.mean(nll_unlab_ref), atol=1e-4, rtol=1e-4)
    # Confidence-path losses (approx-reciprocal factor cancels in the log ratio).
    assert jnp.allclose(labeled_loss, jnp.mean(nll_lab_ref),
                        atol=5e-2, rtol=5e-2)
    assert jnp.allclose(unlabeled_loss, jnp.mean(nll_unlab_ref),
                        atol=5e-2, rtol=5e-2)
    assert jnp.allclose(lab_fused, labeled_loss, atol=1e-4, rtol=1e-4)
    assert jnp.allclose(unlab_fused, unlabeled_loss, atol=1e-4, rtol=1e-4)
    assert bool(jnp.isfinite(total_loss))

    print("KERNEL_OK")
</pallas_src>

<mosaic_0001>
module attributes {stable_mosaic.version = 11 : i64} {
  func.func @_forward_kernel(%arg0: i32, %arg1: i32, %arg2: memref<1x4x256xf32, #tpu.memory_space<vmem>>, %arg3: memref<8x4xf32, #tpu.memory_space<vmem>>, %arg4: memref<8x1xf32, #tpu.memory_space<vmem>>, %arg5: memref<1x8x256xf32, #tpu.memory_space<vmem>>) attributes {dimension_semantics = [#tpu.dimension_semantics<parallel>, #tpu.dimension_semantics<parallel>], iteration_bounds = array<i64: 2, 1>, scalar_prefetch = 0 : i64, scratch_operands = 0 : i64, tpu.core_type = #tpu.core_type<tc>, window_params = [{transform_indices = @transform_0, window_bounds = array<i64: 1, 4, 256>}, {pipeline_mode = #tpu.pipeline_mode<synchronous>, transform_indices = @transform_1, window_bounds = array<i64: 8, 4>}, {pipeline_mode = #tpu.pipeline_mode<synchronous>, transform_indices = @transform_2, window_bounds = array<i64: 8, 1>}, {transform_indices = @transform_3, window_bounds = array<i64: 1, 8, 256>}]} {
    %c0 = arith.constant 0 : index
    %c0_0 = arith.constant 0 : index
    %0 = vector.load %arg3[%c0, %c0_0] : memref<8x4xf32, #tpu.memory_space<vmem>>, vector<8x4xf32>
    %c0_1 = arith.constant 0 : index
    %c0_2 = arith.constant 0 : index
    %c0_3 = arith.constant 0 : index
    %1 = vector.load %arg2[%c0_1, %c0_2, %c0_3] : memref<1x4x256xf32, #tpu.memory_space<vmem>>, vector<1x4x256xf32>
    %2 = vector.shape_cast %1 : vector<1x4x256xf32> to vector<4x256xf32>
    %cst = arith.constant dense<0.000000e+00> : vector<8x256xf32>
    %3 = tpu.matmul %0, %2, %cst {dimension_numbers = #tpu.dot_dimension_numbers<[1], [0], [0], [1], [0, 0, 1, 1], [], []>} : vector<8x4xf32>, vector<4x256xf32>, vector<8x256xf32> -> vector<8x256xf32>
    %c0_4 = arith.constant 0 : index
    %c0_5 = arith.constant 0 : index
    %4 = vector.load %arg4[%c0_4, %c0_5] : memref<8x1xf32, #tpu.memory_space<vmem>>, vector<8x1xf32>
    %5 = vector.broadcast %4 : vector<8x1xf32> to vector<8x256xf32>
    %6 = arith.addf %3, %5 : vector<8x256xf32>
    %cst_6 = arith.constant dense<0xFF800000> : vector<256xf32>
    %7 = vector.multi_reduction <maximumf>, %6, %cst_6 [0] : vector<8x256xf32> to vector<256xf32>
    %8 = vector.shape_cast %7 : vector<256xf32> to vector<1x256xf32>
    %9 = vector.broadcast %8 : vector<1x256xf32> to vector<8x256xf32>
    %10 = arith.subf %6, %9 : vector<8x256xf32>
    %11 = math.exp %10 : vector<8x256xf32>
    %cst_7 = arith.constant dense<0.000000e+00> : vector<256xf32>
    %12 = vector.multi_reduction <add>, %11, %cst_7 [0] : vector<8x256xf32> to vector<256xf32>
    %13 = vector.shape_cast %12 : vector<256xf32> to vector<1x256xf32>
    %14 = tpu.reciprocal %13 {approx = true} : vector<1x256xf32> -> vector<1x256xf32>
    %15 = vector.broadcast %14 : vector<1x256xf32> to vector<8x256xf32>
    %16 = arith.mulf %11, %15 : vector<8x256xf32>
    %c0_8 = arith.constant 0 : index
    %c0_9 = arith.constant 0 : index
    %c0_10 = arith.constant 0 : index
    %17 = vector.load %arg5[%c0_8, %c0_9, %c0_10] : memref<1x8x256xf32, #tpu.memory_space<vmem>>, vector<1x8x256xf32>
    %18 = vector.shape_cast %17 : vector<1x8x256xf32> to vector<8x256xf32>
    %19 = vector.shape_cast %16 : vector<8x256xf32> to vector<1x8x256xf32>
    tpu.vector_store %arg5[%c0_8, %c0_9, %c0_10], %19 {strides = array<i32>} : memref<1x8x256xf32, #tpu.memory_space<vmem>>, vector<1x8x256xf32>,
    return
  }
  func.func @transform_0(%arg0: i32, %arg1: i32) -> (i32, i32, i32) {
    %c0_i32 = arith.constant 0 : i32
    %c0_i32_0 = arith.constant 0 : i32
    return %arg0, %c0_i32, %arg1 : i32, i32, i32
  }
  func.func @transform_1(%arg0: i32, %arg1: i32) -> (i32, i32) {
    %c0_i32 = arith.constant 0 : i32
    %c0_i32_0 = arith.constant 0 : i32
    %c0_i32_1 = arith.constant 0 : i32
    return %c0_i32, %c0_i32_0 : i32, i32
  }
  func.func @transform_2(%arg0: i32, %arg1: i32) -> (i32, i32) {
    %c0_i32 = arith.constant 0 : i32
    %c0_i32_0 = arith.constant 0 : i32
    %c0_i32_1 = arith.constant 0 : i32
    return %c0_i32, %c0_i32_0 : i32, i32
  }
  func.func @transform_3(%arg0: i32, %arg1: i32) -> (i32, i32, i32) {
    %c0_i32 = arith.constant 0 : i32
    %c0_i32_0 = arith.constant 0 : i32
    return %arg0, %c0_i32, %arg1 : i32, i32, i32
  }
}

</mosaic_0001>

<llo_original>
// kernel: tpu_custom_call.1
$region0: #{tpu_custom_call.1}
  #allocation0 [shape = 'u32[]', space=smem, size = 0x4, offset = 0x4, fixed_abs, tag = 'smem constant byte address 0x4 - core index']
  #allocation1 [shape = 'u32[144,128]{1,0:T(1,128)}', space=vmem, size = 0x12000, scoped, tag = 'internal scratch']
  %s0 = inlined_call_operand.vmem [shape: f32[2,4,256], index: 0, kind: input, shape index: {}]
  %s1 = inlined_call_operand.vmem [shape: f32[8,4], index: 1, kind: input, shape index: {}]
  %s2 = inlined_call_operand.vmem [shape: f32[8,1], index: 2, kind: input, shape index: {}]
  %s3 = inlined_call_operand.hbm [shape: f32[2,8,256], index: 3, kind: output, shape index: {}]
  %s4 = sld [smem:[#allocation0]]
  $region45: #{tpu_custom_call.1} parent=0
    _
  %s6 = ssub.s32 1, %s4
  %s7 = scalar_select 0, %s6, %s4
  $region1: #{tpu_custom_call.1} parent=0
    #allocation2 [shape = 'u8[16384]{0}', space=vmem, size = 0x4000, scoped, tag = 'output window, operand 0']
    #allocation3 [shape = 's32[2]{0}', space=sflag, size = 0x8, scoped, tag = 'scoped memory for tpu_custom_call.1']
    %8 = vsyncpa [#allocation3], 0
    %s9 = scalar_lea.sflag [#allocation3], 1
    %10 = vsyncpa %s9, 0
    loop: start=0, step=1, limit=4
    $region2: #{tpu_custom_call.1} parent=1 // loop_pre_header
      _
    $region3: #{tpu_custom_call.1} parent=1 // loop_header
      %s12 = sphi 0, %s16
      %p13 = scmp.ge.s32.totalorder %s12, 4
      %s19 = sphi 0, %s31
      %s20 = sphi 0, %s27
      %s21 = sphi 0, %s19
      %s22 = sphi 0, %s20
      %s23 = sphi 0, %s21
      %s24 = sphi 0, %s22
      %s36 = sphi 0, %s38
      %s39 = sphi 0, %s36
      %s40 = sphi 0, %s39
      %s56 = sphi 0, %s40
      %s60 = sphi 0, %s60
      %s62 = sphi 0, %s60
      %s63 = sphi 0, %s62
      %s77 = sphi 0, %s63
      %s81 = sphi 0, %s81
      %s83 = sphi 0, %s81
      %s84 = sphi 0, %s83
      %s98 = sphi 0, %s84
      %s106 = sphi 0, %s108
      %s109 = sphi 0, %s106
      %s110 = sphi 0, %s109
      %s126 = sphi 0, %s110
    $region4: #{tpu_custom_call.1} parent=1 // loop_header_branch
      %15 = sbr.rel (%p13) target = $region8
    $region5: #{tpu_custom_call.1} parent=1 // loop_body
      %s17 = ssub.s32 %s12, 1
      %s18 = ssub.s32 %s12, 2
      %s25 = sadd.s32 1, %s20
      %p26 = scmp.ge.s32.totalorder %s25, 1
      %s27 = scalar_select %p26, 0, %s25
      %s28 = sadd.s32 1, %s19
      %s29 = scalar_select %p26, %s28, %s19
      %p30 = scmp.ge.s32.totalorder %s29, 2
      %s31 = scalar_select %p30, 0, %s29
      %s32 = ssub.s32 %s19, %s31
      %s33 = ssub.s32 %s20, %s27
      %s34 = sor.u32 %s32, %s33
      %p35 = scmp.eq.s32.totalorder %s34, 0
      %s37 = sadd.s32 %s36, 1
      %s38 = scalar_select %p35, %s36, %s37
      %p41 = pneg %p35
      %p42 = scmp.eq.s32.totalorder %s12, 1
      %p43 = por %p41, %p42
      %p44 = scmp.ne.s32.totalorder %s36, %s39
      %p45 = scmp.eq.s32.totalorder %s12, 0
      %p46 = por %p44, %p45
      %p47 = scmp.ne.s32.totalorder %s36, %s39
      %p48 = scmp.eq.s32.totalorder %s17, 1
      %p49 = por %p47, %p48
      %p50 = scmp.ne.s32.totalorder %s39, %s40
      %p51 = scmp.eq.s32.totalorder %s17, 0
      %p52 = por %p50, %p51
      %p53 = scmp.ne.s32.totalorder %s39, %s40
      %p54 = scmp.eq.s32.totalorder %s18, 1
      %p55 = por %p53, %p54
      %p57 = scmp.ne.s32.totalorder %s40, %s56
      %p58 = scmp.eq.s32.totalorder %s18, 0
      %p59 = por %p57, %p58
      %s61 = sadd.s32 %s60, 1
      %p64 = scmp.eq.s32.totalorder %s12, 1
      %p65 = scmp.ne.s32.totalorder %s60, %s62
      %p66 = scmp.eq.s32.totalorder %s12, 0
      %p67 = por %p65, %p66
      %p68 = scmp.ne.s32.totalorder %s60, %s62
      %p69 = scmp.eq.s32.totalorder %s17, 1
      %p70 = por %p68, %p69
      %p71 = scmp.ne.s32.totalorder %s62, %s63
      %p72 = scmp.eq.s32.totalorder %s17, 0
      %p73 = por %p71, %p72
      %p74 = scmp.ne.s32.totalorder %s62, %s63
      %p75 = scmp.eq.s32.totalorder %s18, 1
      %p76 = por %p74, %p75
      %p78 = scmp.ne.s32.totalorder %s63, %s77
      %p79 = scmp.eq.s32.totalorder %s18, 0
      %p80 = por %p78, %p79
      %s82 = sadd.s32 %s81, 1
      %p85 = scmp.eq.s32.totalorder %s12, 1
      %p86 = scmp.ne.s32.totalorder %s81, %s83
      %p87 = scmp.eq.s32.totalorder %s12, 0
      %p88 = por %p86, %p87
      %p89 = scmp.ne.s32.totalorder %s81, %s83
      %p90 = scmp.eq.s32.totalorder %s17, 1
      %p91 = por %p89, %p90
      %p92 = scmp.ne.s32.totalorder %s83, %s84
      %p93 = scmp.eq.s32.totalorder %s17, 0
      %p94 = por %p92, %p93
      %p95 = scmp.ne.s32.totalorder %s83, %s84
      %p96 = scmp.eq.s32.totalorder %s18, 1
      %p97 = por %p95, %p96
      %p99 = scmp.ne.s32.totalorder %s84, %s98
      %p100 = scmp.eq.s32.totalorder %s18, 0
      %p101 = por %p99, %p100
      %s102 = ssub.s32 %s19, %s31
      %s103 = ssub.s32 %s20, %s27
      %s104 = sor.u32 %s102, %s103
      %p105 = scmp.eq.s32.totalorder %s104, 0
      %s107 = sadd.s32 %s106, 1
      %s108 = scalar_select %p105, %s106, %s107
      %p111 = pneg %p105
      %p112 = scmp.eq.s32.totalorder %s12, 1
      %p113 = por %p111, %p112
      %p114 = scmp.ne.s32.totalorder %s106, %s109
      %p115 = scmp.eq.s32.totalorder %s12, 0
      %p116 = por %p114, %p115
      %p117 = scmp.ne.s32.totalorder %s106, %s109
      %p118 = scmp.eq.s32.totalorder %s17, 1
      %p119 = por %p117, %p118
      %p120 = scmp.ne.s32.totalorder %s109, %s110
      %p121 = scmp.eq.s32.totalorder %s17, 0
      %p122 = por %p120, %p121
      %p123 = scmp.ne.s32.totalorder %s109, %s110
      %p124 = scmp.eq.s32.totalorder %s18, 1
      %p125 = por %p123, %p124
      %p127 = scmp.ne.s32.totalorder %s110, %s126
      %p128 = scmp.eq.s32.totalorder %s18, 0
      %p129 = por %p127, %p128
      %p130 = scmp.le.s32.totalorder 1, %s12
      %p131 = scmp.lt.s32.totalorder %s12, 3
      %p132 = pnand %p130, %p131
      %p133 = pneg %p132
      // Predicated region
      $region9: #{tpu_custom_call.1} parent=5 // pred_check
        _
      $region10: #{tpu_custom_call.1} parent=5 // pred_check_branch
        %135 = sbr.rel (%p132) target = $region12
      $region11: #{tpu_custom_call.1} parent=5 // pred_region
        %s136 = ssub.s32 %s12, 1
        // Predicated region
        $region13: #{tpu_custom_call.1} parent=11 // pred_check
          %p137 = pneg %p73
        $region14: #{tpu_custom_call.1} parent=11 // pred_check_branch
          %139 = sbr.rel (%p137) target = $region16
        $region15: #{tpu_custom_call.1} parent=11 // pred_region
          _
        $region16: #{tpu_custom_call.1} parent=11 // pred_fallthru
          _
        // Predicated region
        $region17: #{tpu_custom_call.1} parent=11 // pred_check
          %p140 = pneg %p94
        $region18: #{tpu_custom_call.1} parent=11 // pred_check_branch
          %142 = sbr.rel (%p140) target = $region20
        $region19: #{tpu_custom_call.1} parent=11 // pred_region
          _
        $region20: #{tpu_custom_call.1} parent=11 // pred_fallthru
          _
      $region12: #{tpu_custom_call.1} parent=5 // pred_fallthru
        _
      %p143 = scmp.lt.s32.totalorder %s12, 2
      // Predicated region
      $region21: #{tpu_custom_call.1} parent=5 // pred_check
        %p144 = pneg %p143
      $region22: #{tpu_custom_call.1} parent=5 // pred_check_branch
        %146 = sbr.rel (%p144) target = $region24
      $region23: #{tpu_custom_call.1} parent=5 // pred_region
        // Predicated region
        $region25: #{tpu_custom_call.1} parent=23 // pred_check
          %p147 = pneg %p46
        $region26: #{tpu_custom_call.1} parent=23 // pred_check_branch
          %149 = sbr.rel (%p147) target = $region28
        $region27: #{tpu_custom_call.1} parent=23 // pred_region
          %s150 = smul.u32 2, %s20
          %p151 = scmp.lt.s32.totalorder %s19, 1
          %s152 = scalar_select %p151, %s19, 1
          %p153 = scmp.lt.s32.totalorder %s150, 1
          %s154 = scalar_select %p153, %s150, 1
          %s155 = smul.addr %s152, 2
          %s156 = sadd.s32 %s154, %s155
          %s157 = smul.addr %s156, 4
          %s158 = scalar_lea.vmem %s0, %s157
          %s159 = smul.u32 2, %s20
        $region28: #{tpu_custom_call.1} parent=23 // pred_fallthru
          _
      $region24: #{tpu_custom_call.1} parent=5 // pred_fallthru
        _
      %p160 = scmp.le.s32.totalorder 1, %s12
      %p161 = scmp.lt.s32.totalorder %s12, 3
      %p162 = pnand %p160, %p161
      %p163 = pneg %p162
      // Predicated region
      $region29: #{tpu_custom_call.1} parent=5 // pred_check
        _
      $region30: #{tpu_custom_call.1} parent=5 // pred_check_branch
        %165 = sbr.rel (%p162) target = $region32
      $region31: #{tpu_custom_call.1} parent=5 // pred_region
        %s166 = ssub.s32 %s12, 1
        %s167 = smul.u32 2, %s22
        %p168 = scmp.lt.s32.totalorder %s21, 1
        %s169 = scalar_select %p168, %s21, 1
        %p170 = scmp.lt.s32.totalorder %s167, 1
        %s171 = scalar_select %p170, %s167, 1
        %s172 = smul.addr %s169, 2
        %s173 = sadd.s32 %s171, %s172
        %s174 = smul.addr %s173, 4
        %s175 = scalar_lea.vmem %s0, %s174
        %p176 = pneg %p52
        %p177 = pneg %p49
        %p178 = pneg %p73
        %p179 = pneg %p70
        %p180 = pneg %p94
        %p181 = pneg %p91
        %p182 = pneg %p122
        %p183 = pneg %p119
        %s184 = sand.u32 %s109, 1
        %s185 = scalar_lea.sflag [#allocation3], %s184
        %s186 = sand.u32 %s109, 1
        %s187 = smul.addr %s186, 16
        %s188 = scalar_lea.vmem [#allocation2], %s187
        %s189 = smul.u32 2, %s22
        %p190 = scmp.lt.s32.totalorder %s21, 1
        %s191 = scalar_select %p190, %s21, 1
        %p192 = scmp.lt.s32.totalorder %s189, 1
        %s193 = scalar_select %p192, %s189, 1
        %s194 = smul.addr %s191, 2
        %s195 = sadd.s32 %s193, %s194
        %s196 = smul.addr %s195, 4
        %s197 = scalar_lea.vmem %s0, %s196
        %s198 = smul.u32 2, %s22
        %s199 = smul.u32 2, %s22
        %v200 = vld [vmem:[%s1] sm:$0xff]
        %v201 = vld [vmem:[%s197] sm:$0xff]
        %v202 = vld [vmem:[%s2] sm:$0xff]
        %204 = vset.pattern.permute.xlu0 0
        %205 = vperm.xlu0 %204, %v202
        %v206 = vpop.permute.xlu0 %205
        %v209 = vcombine.high %v201, %v201
        %vm210 = vcmask 31744
        %v212 = vsel %vm210, %v200, 0
        %vm214 = vcmask 1043456
        %v215 = vsel %vm214, %v201, 0
        %v217 = vsel %vm214, %v209, 0
        %219 = vmatprep.subr.mxu0 %v217
        %220 = vmatpush1.msra.mxu0 %v215
        %221 = vmatprep.subr.mxu0 0.0
        %222 = vmatpush1.msra.mxu0 0.0
        %223 = vmatprep.subr.mxu0 0.0
        %224 = vmatpush1.msra.mxu0 0.0
        %225 = vmatprep.subr.mxu0 0.0
        %226 = vmatpush1.msra.mxu0 0.0
        %227 = vmatprep.subr.mxu0 0.0
        %228 = vmatpush1.msra.mxu0 0.0
        %229 = vmatprep.subr.mxu0 0.0
        %230 = vmatpush1.msra.mxu0 0.0
        %231 = vmatprep.subr.mxu0 0.0
        %232 = vmatpush1.msra.mxu0 0.0
        %233 = vmatprep.subr.mxu0 0.0
        %234 = vmatpush1.msra.mxu0 0.0
        %235 = vmatprep.subr.mxu0 0.0
        %236 = vmatpush1.msra.mxu0 0.0
        %237 = vmatprep.subr.mxu0 0.0
        %238 = vmatpush1.msra.mxu0 0.0
        %239 = vmatprep.subr.mxu0 0.0
        %240 = vmatpush1.msra.mxu0 0.0
        %241 = vmatprep.subr.mxu0 0.0
        %242 = vmatpush1.msra.mxu0 0.0
        %243 = vmatprep.subr.mxu0 0.0
        %244 = vmatpush1.msra.mxu0 0.0
        %245 = vmatprep.subr.mxu0 0.0
        %246 = vmatpush1.msra.mxu0 0.0
        %247 = vmatprep.subr.mxu0 0.0
        %248 = vmatpush1.msra.mxu0 0.0
        %249 = vmatprep.subr.mxu0 0.0
        %250 = vmatpush1.msra.mxu0 0.0
        %251 = vmatprep.subr.mxu0 0.0
        %252 = vmatpush1.msra.mxu0 0.0
        %253 = vmatprep.subr.mxu0 0.0
        %254 = vmatpush1.msra.mxu0 0.0
        %255 = vmatprep.subr.mxu0 0.0
        %256 = vmatpush1.msra.mxu0 0.0
        %257 = vmatprep.subr.mxu0 0.0
        %258 = vmatpush1.msra.mxu0 0.0
        %259 = vmatprep.subr.mxu0 0.0
        %260 = vmatpush1.msra.mxu0 0.0
        %261 = vmatprep.subr.mxu0 0.0
        %262 = vmatpush1.msra.mxu0 0.0
        %263 = vmatprep.subr.mxu0 0.0
        %264 = vmatpush1.msra.mxu0 0.0
        %265 = vmatprep.subr.mxu0 0.0
        %266 = vmatpush1.msra.mxu0 0.0
        %267 = vmatprep.subr.mxu0 0.0
        %268 = vmatpush1.msra.mxu0 0.0
        %269 = vmatprep.subr.mxu0 0.0
        %270 = vmatpush1.msra.mxu0 0.0
        %271 = vmatprep.subr.mxu0 0.0
        %272 = vmatpush1.msra.mxu0 0.0
        %273 = vmatprep.subr.mxu0 0.0
        %274 = vmatpush1.msra.mxu0 0.0
        %275 = vmatprep.subr.mxu0 0.0
        %276 = vmatpush1.msra.mxu0 0.0
        %277 = vmatprep.subr.mxu0 0.0
        %278 = vmatpush1.msra.mxu0 0.0
        %279 = vmatprep.subr.mxu0 0.0
        %280 = vmatpush1.msra.mxu0 0.0
        %281 = vmatprep.subr.mxu0 0.0
        %282 = vmatpush1.msra.mxu0 0.0
        %283 = vmatprep.mubr.f32.mxu0 0.0
        %284 = vmatmul.mubr.f32.gmra.mrb[0].mxu0 %v212
        %v285 = vpop.f32.mrb[0].mxu0
        %v286 = vadd.f32 %v206, %v285
        %v287 = vpop.f32.mrb[0].mxu0
        %v288 = vadd.f32 %v206, %v287
        %289 = vdwg.mxu0
        %v290 = vrot.slane %v286, 4
        %v291 = vmax.f32 %v286, %v290
        %v292 = vrot.slane %v291, 2
        %v293 = vmax.f32 %v291, %v292
        %v294 = vrot.slane %v293, 1
        %v295 = vmax.f32 %v293, %v294
        %v296 = vrot.slane %v288, 4
        %v297 = vmax.f32 %v288, %v296
        %v298 = vrot.slane %v297, 2
        %v299 = vmax.f32 %v297, %v298
        %v300 = vrot.slane %v299, 1
        %v301 = vmax.f32 %v299, %v300
        %v302 = vsub.f32 %v286, %v295
        %v303 = vsub.f32 %v288, %v301
        %v304 = vmul.f32 %v302, 1.442695
        %v305 = vpow.pop %v304
        %v306 = vmul.f32 %v303, 1.442695
        %v307 = vpow.pop %v306
        %v308 = vrot.slane %v305, 4
        %v309 = vadd.f32 %v305, %v308
        %v310 = vrot.slane %v309, 2
        %v311 = vadd.f32 %v309, %v310
        %v312 = vrot.slane %v311, 1
        %v313 = vadd.f32 %v311, %v312
        %v314 = vrot.slane %v307, 4
        %v315 = vadd.f32 %v307, %v314
        %v316 = vrot.slane %v315, 2
        %v317 = vadd.f32 %v315, %v316
        %v318 = vrot.slane %v317, 1
        %v319 = vadd.f32 %v317, %v318
        %v320 = vrcp.pop %v313
        %v321 = vrcp.pop %v319
        %v322 = vmul.f32 %v305, %v320
        %v323 = vmul.f32 %v307, %v321
        %324 = vst [vmem:[%s188] sm:$0xff] %v322
        %325 = vst [vmem:[%s188 + $0x8] sm:$0xff] %v323
        %s326 = sand.u32 %s109, 1
        %s327 = scalar_lea.sflag [#allocation3], %s326
        %s328 = sand.u32 %s109, 1
        %s329 = smul.addr %s328, 16
        %s330 = scalar_lea.vmem [#allocation2], %s329
        // Predicated region
        $region33: #{tpu_custom_call.1} parent=31 // pred_check
          %p331 = pneg %p119
        $region34: #{tpu_custom_call.1} parent=31 // pred_check_branch
          %333 = sbr.rel (%p331) target = $region36
        $region35: #{tpu_custom_call.1} parent=31 // pred_region
          %s334 = smul.u32 2, %s22
          %s336 = ssub.s32 256, 256
          %337 = vsyncadd %s327, %s336
          %s338 = smul.addr %s21, 2
          %s339 = sadd.s32 %s334, %s338
          %s340 = smul.addr %s339, 128
          %s341 = scalar_lea.hbm %s3, %s340
          %s343 = sshll.u32 %s330, 4
          %s344 = int_to_ptr.vmem [resolvable:$true] %s343
          %346 = dma.vmem_to_hbm [thread:$0]  %s344, 256, %s341, %s327
        $region36: #{tpu_custom_call.1} parent=31 // pred_fallthru
          _
      $region32: #{tpu_custom_call.1} parent=5 // pred_fallthru
        _
      %p347 = scmp.le.s32.totalorder 2, %s12
      // Predicated region
      $region37: #{tpu_custom_call.1} parent=5 // pred_check
        %p348 = pneg %p347
      $region38: #{tpu_custom_call.1} parent=5 // pred_check_branch
        %350 = sbr.rel (%p348) target = $region40
      $region39: #{tpu_custom_call.1} parent=5 // pred_region
        %s351 = ssub.s32 %s12, 2
        // Predicated region
        $region41: #{tpu_custom_call.1} parent=39 // pred_check
          %p352 = pneg %p125
        $region42: #{tpu_custom_call.1} parent=39 // pred_check_branch
          %354 = sbr.rel (%p352) target = $region44
        $region43: #{tpu_custom_call.1} parent=39 // pred_region
          %s355 = sand.u32 %s110, 1
          %s356 = scalar_lea.sflag [#allocation3], %s355
          %s357 = sand.u32 %s110, 1
          %s358 = smul.addr %s357, 16
          %s359 = scalar_lea.vmem [#allocation2], %s358
          %360 = dma.done %s356, 256
        $region44: #{tpu_custom_call.1} parent=39 // pred_fallthru
          _
      $region40: #{tpu_custom_call.1} parent=5 // pred_fallthru
        _
    $region6: #{tpu_custom_call.1} parent=1 // loop_footer
      %s16 = sadd.s32 1, %s12
    $region7: #{tpu_custom_call.1} parent=1 // loop_footer_branch
      %11 = sbr.rel target = $region3
    $region8: #{tpu_custom_call.1} parent=1 // loop_exit
      _
    %361 = vsyncpa [#allocation3], 1
    %s362 = scalar_lea.sflag [#allocation3], 1
    %363 = vsyncpa %s362, 1

</llo_original>
